<compile_context>
chip_gen: v7x
topology: tpu7x:2x2x1
jax: 0.10.0
libtpu: 0.0.40
codegen_flags: <defaults>
</compile_context>

<pallas_src>
import functools

import jax
import jax.numpy as jnp
from jax import lax
from jax.experimental import pallas as pl
from jax.experimental.pallas import tpu as pltpu


def _bt_tile_kernel(z1t_ref, z2_ref, out_ref, *, n_strips, strip):
    """Accumulate sum(cross_tile^2) for output row-tile i across the j sweep."""
    j = pl.program_id(1)

    # Output block index depends only on i -> resident across the whole j loop,
    # so it doubles as the accumulator (init on first j, writeback after last j).
    @pl.when(j == 0)
    def _init():
        out_ref[...] = jnp.zeros_like(out_ref)

    z1t = z1t_ref[...]                        # (tI, B), lhs already transposed

    if n_strips == 1:
        c = jnp.dot(z1t, z2_ref[...], preferred_element_type=jnp.float32)
        out_ref[...] += jnp.sum(c * c)
    else:
        # Chunk the N dim so the f32 cross intermediate stays <= (tI, strip)
        # and is squared/reduced before the next chunk (vreg/VMEM pressure).
        def body(s, acc):
            start = pl.multiple_of(s * strip, 128)
            z2c = z2_ref[:, pl.ds(start, strip)]                  # (B, strip)
            c = jnp.dot(z1t, z2c, preferred_element_type=jnp.float32)
            return acc + jnp.sum(c * c)

        out_ref[...] += lax.fori_loop(0, n_strips, body, jnp.float32(0.0),
                                      unroll=True)


def _largest_tile(d, cap):
    """Largest multiple-of-128 divisor of d that is <= cap (falls back to 128)."""
    cap = max(128, min(cap, d))
    best = 128
    t = 128
    while t <= cap:
        if d % t == 0:
            best = t
        t += 128
    return best


def _select_tiles(batch_size, z_dim, itemsize):
    """Generation-aware (tI, tJ, strip, vmem_limit_bytes) selection."""
    try:
        vmem_cap = int(pltpu.get_tpu_info().vmem_capacity_bytes)
    except Exception:
        vmem_cap = 64 * 1024 * 1024          # v7x-safe conservative default
    # Request ~80% of physical VMEM (headroom for Mosaic internal scratch);
    # size the tile working set to ~70% of that.
    vmem_limit = int(vmem_cap * 0.8)
    budget = int(vmem_limit * 0.7)

    # j (z2) tile: moderate; the strip loop keeps the f32 cross tile small.
    tj = _largest_tile(z_dim, 512)
    # i (z1) tile: as large as fits -- z2 HBM traffic scales with D/tI -- but
    # keep >= 2 i-tiles when D allows so the "parallel" axis spans both v7x TCs.
    cap_i = z_dim // 2 if z_dim >= 256 else z_dim
    ti = _largest_tile(z_dim, cap_i)

    def working_set(ti_, tj_):
        strip_ = min(tj_, 256)
        return (2 * ti_ * batch_size * itemsize      # z1t block, double-buffered
                + 2 * batch_size * tj_ * itemsize    # z2 block, double-buffered
                + 2 * ti_ * strip_ * 4               # f32 cross strip (2x slack)
                + 2 * 8 * 128 * 4)                   # output block

    # Shrink tj first (it only affects step count), then ti (z2-reuse lever).
    while tj > 128 and working_set(ti, tj) > budget:
        tj = _largest_tile(z_dim, tj - 128)
    while ti > 128 and working_set(ti, tj) > budget:
        ti = _largest_tile(z_dim, ti - 128)

    return ti, tj, min(tj, 256), vmem_limit


def barlow_twins_loss(z1, z2, *, lambda_coeff=0.005, use_bf16_matmul=True):
    """Pallas implementation of BarlowTwinsLoss.forward(z1, z2)."""
    assert z1.shape == z2.shape and z1.ndim == 2
    batch_size, z_dim = z1.shape
    assert batch_size >= 2, "unbiased std (ddof=1) needs batch_size >= 2"
    assert z_dim % 128 == 0, "z_dim must be a multiple of 128 (lane width)"

    lam = jnp.float32(lambda_coeff)
    z1 = z1.astype(jnp.float32)
    z2 = z2.astype(jnp.float32)

    def _normalize(z):
        mean = jnp.mean(z, axis=0, keepdims=True)
        # torch.std uses the unbiased estimator (ddof=1); fold 1/sqrt(B) so the
        # kernel matmul needs no further scaling.
        var = jnp.sum((z - mean) ** 2, axis=0, keepdims=True) / jnp.float32(
            batch_size - 1)
        return (z - mean) * (lax.rsqrt(var) * lax.rsqrt(jnp.float32(batch_size)))

    z1s = _normalize(z1)                       # (B, D) f32, includes 1/sqrt(B)
    z2s = _normalize(z2)

    # Exact f32 diagonal of the cross matrix (kept out of the bf16 path):
    # c_dd = sum_b z1s[b,d] * z2s[b,d].
    diag = jnp.sum(z1s * z2s, axis=0)          # (D,)
    diag_term = jnp.sum((diag - 1.0) ** 2 - lam * diag * diag)

    op_dtype = jnp.bfloat16 if use_bf16_matmul else jnp.float32
    z1t = z1s.T.astype(op_dtype)               # (D, B) pre-transposed lhs
    z2m = z2s.astype(op_dtype)                 # (B, D)

    ti, tj, strip, vmem_limit = _select_tiles(
        batch_size, z_dim, jnp.dtype(op_dtype).itemsize)
    n_i, n_j = z_dim // ti, z_dim // tj
    n_strips = tj // strip

    kernel = functools.partial(_bt_tile_kernel, n_strips=n_strips, strip=strip)

    partials = pl.pallas_call(
        kernel,
        out_shape=jax.ShapeDtypeStruct((n_i, 8, 128), jnp.float32),
        grid_spec=pltpu.PrefetchScalarGridSpec(
            num_scalar_prefetch=0,
            grid=(n_i, n_j),
            in_specs=[
                pl.BlockSpec((ti, batch_size), lambda i, j: (i, 0)),   # z1^T slab
                pl.BlockSpec((batch_size, tj), lambda i, j: (0, j)),   # z2 slab
            ],
            out_specs=pl.BlockSpec((1, 8, 128), lambda i, j: (i, 0, 0)),
        ),
        compiler_params=pltpu.CompilerParams(
            # i: independent output rows -> shards across v7x's 2 TensorCores.
            # j: accumulation axis (output revisited) -> arbitrary, innermost.
            dimension_semantics=("parallel", "arbitrary"),
            vmem_limit_bytes=vmem_limit,
        ),
    )(z1t, z2m)

    # Each (8,128) row block is a constant holding that i-row's partial sum.
    return lam * jnp.sum(partials[:, 0, 0]) + diag_term


def _reference_loss(z1, z2, lambda_coeff=0.005):
    # Plain-JAX reference mirroring the PyTorch module exactly.
    b = z1.shape[0]
    z1n = (z1 - jnp.mean(z1, axis=0)) / jnp.std(z1, axis=0, ddof=1)
    z2n = (z2 - jnp.mean(z2, axis=0)) / jnp.std(z2, axis=0, ddof=1)
    c = (z1n.T @ z2n) / b
    diag = jnp.diagonal(c)
    on_diag = jnp.sum((diag - 1.0) ** 2)
    off_diag = jnp.sum(c ** 2) - jnp.sum(diag ** 2)
    return on_diag + lambda_coeff * off_diag


if __name__ == "__main__":
    batch_size = 8
    z_dim = 128
    lambda_coeff = 0.005

    key = jax.random.PRNGKey(0)
    k1, k2 = jax.random.split(key)
    z1 = jax.random.normal(k1, (batch_size, z_dim), dtype=jnp.float32)
    z2 = jax.random.normal(k2, (batch_size, z_dim), dtype=jnp.float32)

    loss = barlow_twins_loss(z1, z2, lambda_coeff=lambda_coeff)
    loss = jax.block_until_ready(loss)

    ref = _reference_loss(z1, z2, lambda_coeff)
    assert jnp.allclose(loss, ref, rtol=1e-3, atol=1e-3), (loss, ref)

    print("KERNEL_OK")
</pallas_src>

<mosaic_0001>
module attributes {stable_mosaic.version = 11 : i64} {
  func.func @_bt_tile_kernel(%arg0: i32, %arg1: i32, %arg2: memref<128x8xbf16, #tpu.memory_space<vmem>>, %arg3: memref<8x128xbf16, #tpu.memory_space<vmem>>, %arg4: memref<1x8x128xf32, #tpu.memory_space<vmem>>) attributes {dimension_semantics = [#tpu.dimension_semantics<parallel>, #tpu.dimension_semantics<arbitrary>], iteration_bounds = array<i64: 1, 1>, scalar_prefetch = 0 : i64, scratch_operands = 0 : i64, tpu.core_type = #tpu.core_type<tc>, window_params = [{transform_indices = @transform_0, window_bounds = array<i64: 128, 8>}, {transform_indices = @transform_1, window_bounds = array<i64: 8, 128>}, {transform_indices = @transform_2, window_bounds = array<i64: 1, 8, 128>}]} {
    %c0_i32 = arith.constant 0 : i32
    %0 = arith.cmpi eq, %arg1, %c0_i32 : i32
    %1 = arith.extui %0 : i1 to i32
    %c0_i32_0 = arith.constant 0 : i32
    %2 = arith.cmpi ne, %1, %c0_i32_0 : i32
    scf.if %2 {
      %cst_11 = arith.constant 0.000000e+00 : f32
      %15 = vector.broadcast %cst_11 : f32 to vector<1x8x128xf32>
      %c0_12 = arith.constant 0 : index
      %c0_13 = arith.constant 0 : index
      %c0_14 = arith.constant 0 : index
      %16 = vector.load %arg4[%c0_12, %c0_13, %c0_14] : memref<1x8x128xf32, #tpu.memory_space<vmem>>, vector<1x8x128xf32>
      tpu.vector_store %arg4[%c0_12, %c0_13, %c0_14], %15 {strides = array<i32>} : memref<1x8x128xf32, #tpu.memory_space<vmem>>, vector<1x8x128xf32>,
    } else {
    }
    %c0 = arith.constant 0 : index
    %c0_1 = arith.constant 0 : index
    %3 = vector.load %arg2[%c0, %c0_1] : memref<128x8xbf16, #tpu.memory_space<vmem>>, vector<128x8xbf16>
    %c0_2 = arith.constant 0 : index
    %c0_3 = arith.constant 0 : index
    %4 = vector.load %arg3[%c0_2, %c0_3] : memref<8x128xbf16, #tpu.memory_space<vmem>>, vector<8x128xbf16>
    %cst = arith.constant dense<0.000000e+00> : vector<128x128xf32>
    %5 = tpu.matmul %3, %4, %cst {dimension_numbers = #tpu.dot_dimension_numbers<[1], [0], [0], [1], [0, 0, 1, 1], [], []>} : vector<128x8xbf16>, vector<8x128xbf16>, vector<128x128xf32> -> vector<128x128xf32>
    %c0_4 = arith.constant 0 : index
    %c0_5 = arith.constant 0 : index
    %c0_6 = arith.constant 0 : index
    %6 = vector.load %arg4[%c0_4, %c0_5, %c0_6] : memref<1x8x128xf32, #tpu.memory_space<vmem>>, vector<1x8x128xf32>
    %7 = arith.mulf %5, %5 : vector<128x128xf32>
    %8 = vector.shape_cast %7 : vector<128x128xf32> to vector<1x128x128xf32>
    %cst_7 = arith.constant dense<0.000000e+00> : vector<1xf32>
    %9 = vector.multi_reduction <add>, %8, %cst_7 [1, 2] : vector<1x128x128xf32> to vector<1xf32>
    %10 = vector.shape_cast %9 : vector<1xf32> to vector<1x1x1xf32>
    %11 = vector.extract %10[0, 0, 0] : f32 from vector<1x1x1xf32>
    %12 = vector.broadcast %11 : f32 to vector<1x8x128xf32>
    %13 = arith.addf %6, %12 : vector<1x8x128xf32>
    %c0_8 = arith.constant 0 : index
    %c0_9 = arith.constant 0 : index
    %c0_10 = arith.constant 0 : index
    %14 = vector.load %arg4[%c0_8, %c0_9, %c0_10] : memref<1x8x128xf32, #tpu.memory_space<vmem>>, vector<1x8x128xf32>
    tpu.vector_store %arg4[%c0_8, %c0_9, %c0_10], %13 {strides = array<i32>} : memref<1x8x128xf32, #tpu.memory_space<vmem>>, vector<1x8x128xf32>,
    return
  }
  func.func @transform_0(%arg0: i32, %arg1: i32) -> (i32, i32) {
    %c0_i32 = arith.constant 0 : i32
    %c0_i32_0 = arith.constant 0 : i32
    return %arg0, %c0_i32 : i32, i32
  }
  func.func @transform_1(%arg0: i32, %arg1: i32) -> (i32, i32) {
    %c0_i32 = arith.constant 0 : i32
    %c0_i32_0 = arith.constant 0 : i32
    return %c0_i32, %arg1 : i32, i32
  }
  func.func @transform_2(%arg0: i32, %arg1: i32) -> (i32, i32, i32) {
    %c0_i32 = arith.constant 0 : i32
    %c0_i32_0 = arith.constant 0 : i32
    %c0_i32_1 = arith.constant 0 : i32
    return %arg0, %c0_i32, %c0_i32_0 : i32, i32, i32
  }
}

</mosaic_0001>

<llo_original>
// kernel: tpu_custom_call.1
$region0: #{tpu_custom_call.1}
  #allocation0 [shape = 'u32[]', space=smem, size = 0x4, offset = 0x4, fixed_abs, tag = 'smem constant byte address 0x4 - core index']
  #allocation1 [shape = 'u32[144,128]{1,0:T(1,128)}', space=vmem, size = 0x12000, scoped, tag = 'internal scratch']
  %s0 = inlined_call_operand.vmem [shape: bf16[128,8], index: 0, kind: input, shape index: {}]
  %s1 = inlined_call_operand.vmem [shape: bf16[8,128], index: 1, kind: input, shape index: {}]
  %s2 = inlined_call_operand.hbm [shape: f32[1,8,128], index: 2, kind: output, shape index: {}]
  %s3 = sld [smem:[#allocation0]]
  $region22: #{tpu_custom_call.1} parent=0
    _
  %s5 = ssub.s32 1, %s3
  %s6 = scalar_select 0, %s5, %s3
  $region1: #{tpu_custom_call.1} parent=0
    #allocation2 [shape = 'u8[4096]{0}', space=vmem, size = 0x1000, scoped, tag = 'output window, operand 0, single buffered']
    #allocation3 [shape = 's32[1]{0}', space=sflag, size = 0x4, scoped, tag = 'scoped memory for tpu_custom_call.1']
    %7 = vsyncpa [#allocation3], 0
    // Predicated region
    $region2: #{tpu_custom_call.1} parent=1 // pred_check
      _
    $region3: #{tpu_custom_call.1} parent=1 // pred_check_branch
      %9 = sbr.rel (0) target = $region5
    $region4: #{tpu_custom_call.1} parent=1 // pred_region
      _
    $region5: #{tpu_custom_call.1} parent=1 // pred_fallthru
      _
    // Predicated region
    $region6: #{tpu_custom_call.1} parent=1 // pred_check
      _
    $region7: #{tpu_custom_call.1} parent=1 // pred_check_branch
      %11 = sbr.rel (0) target = $region9
    $region8: #{tpu_custom_call.1} parent=1 // pred_region
      _
    $region9: #{tpu_custom_call.1} parent=1 // pred_fallthru
      _
    %p13 = scmp.eq.s32.totalorder 0, 0
    // Predicated region
    $region10: #{tpu_custom_call.1} parent=1 // pred_check
      %p14 = pneg %p13
    $region11: #{tpu_custom_call.1} parent=1 // pred_check_branch
      %16 = sbr.rel (%p14) target = $region13
    $region12: #{tpu_custom_call.1} parent=1 // pred_region
      %17 = vst [vmem:[#allocation2] sm:$0xff] 0.0
    $region13: #{tpu_custom_call.1} parent=1 // pred_fallthru
      _
    %v18 = vld [vmem:[%s0] sm:$0xf]
    %v19 = vld [vmem:[%s0 + $0x4] sm:$0xf]
    %v20 = vld [vmem:[%s0 + $0x8] sm:$0xf]
    %v21 = vld [vmem:[%s0 + $0xc] sm:$0xf]
    %v22 = vld [vmem:[%s0 + $0x10] sm:$0xf]
    %v23 = vld [vmem:[%s0 + $0x14] sm:$0xf]
    %v24 = vld [vmem:[%s0 + $0x18] sm:$0xf]
    %v25 = vld [vmem:[%s0 + $0x1c] sm:$0xf]
    %v26 = vld [vmem:[%s0 + $0x20] sm:$0xf]
    %v27 = vld [vmem:[%s0 + $0x24] sm:$0xf]
    %v28 = vld [vmem:[%s0 + $0x28] sm:$0xf]
    %v29 = vld [vmem:[%s0 + $0x2c] sm:$0xf]
    %v30 = vld [vmem:[%s0 + $0x30] sm:$0xf]
    %v31 = vld [vmem:[%s0 + $0x34] sm:$0xf]
    %v32 = vld [vmem:[%s0 + $0x38] sm:$0xf]
    %v33 = vld [vmem:[%s0 + $0x3c] sm:$0xf]
    %v34 = vld [vmem:[%s1] sm:$0xf]
    %v51 = vunpack.c.l.b16 %v18
    %v52 = vunpack.c.l.b16 %v19
    %v53 = vunpack.c.l.b16 %v20
    %v54 = vunpack.c.l.b16 %v21
    %v55 = vunpack.c.l.b16 %v22
    %v56 = vunpack.c.l.b16 %v23
    %v57 = vunpack.c.l.b16 %v24
    %v58 = vunpack.c.l.b16 %v25
    %v59 = vunpack.c.l.b16 %v26
    %v60 = vunpack.c.l.b16 %v27
    %v61 = vunpack.c.l.b16 %v28
    %v62 = vunpack.c.l.b16 %v29
    %v63 = vunpack.c.l.b16 %v30
    %v64 = vunpack.c.l.b16 %v31
    %v65 = vunpack.c.l.b16 %v32
    %v66 = vunpack.c.l.b16 %v33
    %v67 = vpack.c.b16 %v52, %v51
    %v68 = vpack.c.b16 %v54, %v53
    %v69 = vpack.c.b16 %v56, %v55
    %v70 = vpack.c.b16 %v58, %v57
    %v71 = vpack.c.b16 %v60, %v59
    %v72 = vpack.c.b16 %v62, %v61
    %v73 = vpack.c.b16 %v64, %v63
    %v74 = vpack.c.b16 %v66, %v65
    %vm75 = vcmask 64512
    %v77 = vsel %vm75, %v67, 0
    %v80 = vsel %vm75, %v68, 0
    %v83 = vsel %vm75, %v69, 0
    %v86 = vsel %vm75, %v70, 0
    %v89 = vsel %vm75, %v71, 0
    %v92 = vsel %vm75, %v72, 0
    %v95 = vsel %vm75, %v73, 0
    %v98 = vsel %vm75, %v74, 0
    %vm100 = vcmask 1043456
    %v102 = vsel %vm100, %v34, 0
    %104 = vmatprep.subr.bf16.mxu0 0
    %105 = vmatpush1.bf16.msra.mxu0 %v102
    %106 = vmatprep.subr.bf16.mxu0 0
    %107 = vmatpush1.bf16.msra.mxu0 0
    %108 = vmatprep.subr.bf16.mxu0 0
    %109 = vmatpush1.bf16.msra.mxu0 0
    %110 = vmatprep.subr.bf16.mxu0 0
    %111 = vmatpush1.bf16.msra.mxu0 0
    %112 = vmatprep.subr.bf16.mxu0 0
    %113 = vmatpush1.bf16.msra.mxu0 0
    %114 = vmatprep.subr.bf16.mxu0 0
    %115 = vmatpush1.bf16.msra.mxu0 0
    %116 = vmatprep.subr.bf16.mxu0 0
    %117 = vmatpush1.bf16.msra.mxu0 0
    %118 = vmatprep.subr.bf16.mxu0 0
    %119 = vmatpush1.bf16.msra.mxu0 0
    %120 = vmatprep.subr.bf16.mxu0 0
    %121 = vmatpush1.bf16.msra.mxu0 0
    %122 = vmatprep.subr.bf16.mxu0 0
    %123 = vmatpush1.bf16.msra.mxu0 0
    %124 = vmatprep.subr.bf16.mxu0 0
    %125 = vmatpush1.bf16.msra.mxu0 0
    %126 = vmatprep.subr.bf16.mxu0 0
    %127 = vmatpush1.bf16.msra.mxu0 0
    %128 = vmatprep.subr.bf16.mxu0 0
    %129 = vmatpush1.bf16.msra.mxu0 0
    %130 = vmatprep.subr.bf16.mxu0 0
    %131 = vmatpush1.bf16.msra.mxu0 0
    %132 = vmatprep.subr.bf16.mxu0 0
    %133 = vmatpush1.bf16.msra.mxu0 0
    %134 = vmatprep.subr.bf16.mxu0 0
    %135 = vmatpush1.bf16.msra.mxu0 0
    %136 = vmatprep.mubr.bf16.mxu0 0
    %137 = vmatmul.mubr.bf16.gmra.mrb[0].mxu0 %v77
    %v138 = vpop.f32.mrb[0].mxu0
    %v139 = vadd.f32 0.0, %v138
    %v140 = vpop.f32.mrb[0].mxu0
    %v141 = vpop.f32.mrb[0].mxu0
    %v142 = vadd.f32 0.0, %v141
    %v143 = vpop.f32.mrb[0].mxu0
    %144 = vmatprep.mubr.bf16.mxu0 0
    %145 = vmatmul.mubr.bf16.gmra.mrb[0].mxu0 %v80
    %v146 = vpop.f32.mrb[0].mxu0
    %v147 = vadd.f32 0.0, %v146
    %v148 = vpop.f32.mrb[0].mxu0
    %v149 = vpop.f32.mrb[0].mxu0
    %v150 = vadd.f32 0.0, %v149
    %v151 = vpop.f32.mrb[0].mxu0
    %152 = vmatprep.mubr.bf16.mxu0 0
    %153 = vmatmul.mubr.bf16.gmra.mrb[0].mxu0 %v83
    %v154 = vpop.f32.mrb[0].mxu0
    %v155 = vadd.f32 0.0, %v154
    %v156 = vpop.f32.mrb[0].mxu0
    %v157 = vpop.f32.mrb[0].mxu0
    %v158 = vadd.f32 0.0, %v157
    %v159 = vpop.f32.mrb[0].mxu0
    %160 = vmatprep.mubr.bf16.mxu0 0
    %161 = vmatmul.mubr.bf16.gmra.mrb[0].mxu0 %v86
    %v162 = vpop.f32.mrb[0].mxu0
    %v163 = vadd.f32 0.0, %v162
    %v164 = vpop.f32.mrb[0].mxu0
    %v165 = vpop.f32.mrb[0].mxu0
    %v166 = vadd.f32 0.0, %v165
    %v167 = vpop.f32.mrb[0].mxu0
    %168 = vmatprep.mubr.bf16.mxu0 0
    %169 = vmatmul.mubr.bf16.gmra.mrb[0].mxu0 %v89
    %v170 = vpop.f32.mrb[0].mxu0
    %v171 = vadd.f32 0.0, %v170
    %v172 = vpop.f32.mrb[0].mxu0
    %v173 = vpop.f32.mrb[0].mxu0
    %v174 = vadd.f32 0.0, %v173
    %v175 = vpop.f32.mrb[0].mxu0
    %176 = vmatprep.mubr.bf16.mxu0 0
    %177 = vmatmul.mubr.bf16.gmra.mrb[0].mxu0 %v92
    %v178 = vpop.f32.mrb[0].mxu0
    %v179 = vadd.f32 0.0, %v178
    %v180 = vpop.f32.mrb[0].mxu0
    %v181 = vpop.f32.mrb[0].mxu0
    %v182 = vadd.f32 0.0, %v181
    %v183 = vpop.f32.mrb[0].mxu0
    %184 = vmatprep.mubr.bf16.mxu0 0
    %185 = vmatmul.mubr.bf16.gmra.mrb[0].mxu0 %v95
    %v186 = vpop.f32.mrb[0].mxu0
    %v187 = vadd.f32 0.0, %v186
    %v188 = vpop.f32.mrb[0].mxu0
    %v189 = vpop.f32.mrb[0].mxu0
    %v190 = vadd.f32 0.0, %v189
    %v191 = vpop.f32.mrb[0].mxu0
    %192 = vmatprep.mubr.bf16.mxu0 0
    %193 = vmatmul.mubr.bf16.gmra.mrb[0].mxu0 %v98
    %v194 = vpop.f32.mrb[0].mxu0
    %v195 = vadd.f32 0.0, %v194
    %v196 = vpop.f32.mrb[0].mxu0
    %v197 = vpop.f32.mrb[0].mxu0
    %v198 = vadd.f32 0.0, %v197
    %v199 = vpop.f32.mrb[0].mxu0
    %200 = vdwg.mxu0
    %v201 = vld [vmem:[#allocation2] sm:$0xff]
    %v202 = vmul.f32 %v139, %v139
    %v203 = vmul.f32 %v142, %v142
    %v204 = vmul.f32 %v147, %v147
    %v205 = vmul.f32 %v150, %v150
    %v206 = vmul.f32 %v155, %v155
    %v207 = vmul.f32 %v158, %v158
    %v208 = vmul.f32 %v163, %v163
    %v209 = vmul.f32 %v166, %v166
    %v210 = vmul.f32 %v171, %v171
    %v211 = vmul.f32 %v174, %v174
    %v212 = vmul.f32 %v179, %v179
    %v213 = vmul.f32 %v182, %v182
    %v214 = vmul.f32 %v187, %v187
    %v215 = vmul.f32 %v190, %v190
    %v216 = vmul.f32 %v195, %v195
    %v217 = vmul.f32 %v198, %v198
    %v218 = vadd.f32 %v202, %v203
    %v219 = vadd.f32 %v218, %v204
    %v220 = vadd.f32 %v219, %v205
    %v221 = vadd.f32 %v220, %v206
    %v222 = vadd.f32 %v221, %v207
    %v223 = vadd.f32 %v222, %v208
    %v224 = vadd.f32 %v223, %v209
    %v225 = vadd.f32 %v224, %v210
    %v226 = vadd.f32 %v225, %v211
    %v227 = vadd.f32 %v226, %v212
    %v228 = vadd.f32 %v227, %v213
    %v229 = vadd.f32 %v228, %v214
    %v230 = vadd.f32 %v229, %v215
    %v231 = vadd.f32 %v230, %v216
    %v232 = vadd.f32 %v231, %v217
    %233 = vadd.xlane.f32.xlu0 %v232
    %v234 = vpop.xlane.xlu0 %233
    %v235 = vrot.slane %v234, 4
    %v236 = vadd.f32 %v234, %v235
    %v237 = vrot.slane %v236, 2
    %v238 = vadd.f32 %v236, %v237
    %v239 = vrot.slane %v238, 1
    %v240 = vadd.f32 %v238, %v239
    %s241 = vtos %v240
    %v242 = vstv %s241
    %v243 = vadd.f32 %v201, %v242
    %244 = vst [vmem:[#allocation2] sm:$0xff] %v243
    // Predicated region
    $region14: #{tpu_custom_call.1} parent=1 // pred_check
      _
    $region15: #{tpu_custom_call.1} parent=1 // pred_check_branch
      %246 = sbr.rel (0) target = $region17
    $region16: #{tpu_custom_call.1} parent=1 // pred_region
      %s248 = ssub.s32 128, 128
      %249 = vsyncadd [#allocation3], %s248
      %s251 = sshll.u32 [#allocation2], 4
      %s252 = int_to_ptr.vmem [resolvable:$true] %s251
      %254 = dma.vmem_to_hbm [thread:$0]  %s252, 128, %s2, [#allocation3]
    $region17: #{tpu_custom_call.1} parent=1 // pred_fallthru
      _
    // Predicated region
    $region18: #{tpu_custom_call.1} parent=1 // pred_check
      _
    $region19: #{tpu_custom_call.1} parent=1 // pred_check_branch
      %256 = sbr.rel (0) target = $region21
    $region20: #{tpu_custom_call.1} parent=1 // pred_region
      %257 = dma.done [#allocation3], 128
    $region21: #{tpu_custom_call.1} parent=1 // pred_fallthru
      _
    %258 = vsyncpa [#allocation3], 1

</llo_original>
